<compile_context>
chip_gen: v6e
topology: v6e:2x2x1
jax: 0.10.0
libtpu: 0.0.40
codegen_flags: <defaults>
</compile_context>

<pallas_src>
import jax
import jax.numpy as jnp
from jax.experimental import pallas as pl
from jax.experimental.pallas import tpu as pltpu

# ---- synthetic cfg (small shapes consistent with the module) ---------------
NUM_POINTS = 128          # cfg.NUM_POINTS
LOCAL_FEATURE_DIM = 32    # cfg.LOCAL_FEATURE_DIM
HIDDEN = 64               # self.mlps = [[64]]
D_IN = 3                  # input point dimension
GEM_EPS = 1e-6            # GeM clamp epsilon
GEM_P_INIT = 3.0          # GeM power init


def epn_gem_kernel(x_ref, w1_ref, b1_ref, w2_ref, b2_ref, p_ref,
                   feat_ref, gem_ref):
    """Single gridless invocation; natural (points, channels) layout.

    x_ref:    (B*N, 3)   points on sublanes, xyz on lanes
    w1_ref:   (3, H)
    b1_ref:   (1, H)
    w2_ref:   (H, F)
    b2_ref:   (1, F)
    p_ref:    (1,)       GeM exponent, SMEM scalar
    feat_ref: (B*N, F)   x_frontend (flat natural layout)
    gem_ref:  (B, F)     x_out
    """
    bn = x_ref.shape[0]
    num_batches = gem_ref.shape[0]
    n = bn // num_batches

    x = x_ref[...]                                    # (B*N, 3)
    w1 = w1_ref[...]                                  # (3, H)

    # --- layer 1 (3 -> H): three VPU FMAs; K=3 is too small to feed the MXU.
    # TODO(synk): if the bundle dump shows the (B*N,1) lane broadcasts lower
    # to expensive cross-lane sequences, switch to a zero-padded K=8 MXU dot.
    h = x[:, 0:1] * w1[0:1, :]
    h = h + x[:, 1:2] * w1[1:2, :]
    h = h + x[:, 2:3] * w1[2:3, :]
    h = jnp.maximum(h + b1_ref[...], 0.0)             # (B*N, H), ReLU

    # --- layer 2 (linear out-block, H -> F) on the MXU ----------------------
    f = jnp.dot(h, w2_ref[...], preferred_element_type=jnp.float32)
    f = f + b2_ref[...]                               # (B*N, F)
    feat_ref[...] = f                                 # x_frontend

    # --- GeM pooling per batch: ( mean_n clamp(f, eps)^p )^(1/p) ------------
    p = p_ref[0]                                      # SMEM scalar
    inv_p = 1.0 / p                                   # exact scalar reciprocal
    c = jnp.maximum(f, GEM_EPS)
    powed = jnp.exp(p * jnp.log(c))                   # c ** p, one EUP pass

    # per-batch mean over points (static 2-D sublane reductions), then one
    # fused finalize: single log/mul/exp pass and a single (B, F) store.
    pooled = jnp.concatenate(
        [jnp.mean(powed[b * n:(b + 1) * n, :], axis=0, keepdims=True)
         for b in range(num_batches)],
        axis=0)                                       # (B, F), strictly > 0
    gem_ref[...] = jnp.exp(jnp.log(pooled) * inv_p)   # pooled ** (1/p)


def epn_gem_forward(x, w1, b1, w2, b2, p):
    """x: (B, N, 3) float32 -> (x_out (B, F), x_frontend (B, N, F))."""
    B, N, d_in = x.shape
    H = w1.shape[1]
    F = w2.shape[1]
    BN = B * N

    # Only free (contiguous) reshapes around the call — no transposes.
    x_flat = x.reshape(BN, d_in)                      # bitcast
    b1_row = b1.reshape(1, H)
    b2_row = b2.reshape(1, F)

    feat, gem = pl.pallas_call(
        epn_gem_kernel,
        out_shape=(
            jax.ShapeDtypeStruct((BN, F), jnp.float32),   # x_frontend (flat)
            jax.ShapeDtypeStruct((B, F), jnp.float32),    # x_out
        ),
        in_specs=[
            pl.BlockSpec(memory_space=pltpu.MemorySpace.VMEM),   # x
            pl.BlockSpec(memory_space=pltpu.MemorySpace.VMEM),   # w1
            pl.BlockSpec(memory_space=pltpu.MemorySpace.VMEM),   # b1
            pl.BlockSpec(memory_space=pltpu.MemorySpace.VMEM),   # w2
            pl.BlockSpec(memory_space=pltpu.MemorySpace.VMEM),   # b2
            pl.BlockSpec(memory_space=pltpu.MemorySpace.SMEM),   # GeM p
        ],
        out_specs=(
            pl.BlockSpec(memory_space=pltpu.MemorySpace.VMEM),
            pl.BlockSpec(memory_space=pltpu.MemorySpace.VMEM),
        ),
    )(x_flat, w1, b1_row, w2, b2_row, p)

    x_frontend = feat.reshape(B, N, F)                # bitcast
    x_out = gem                                       # already (B, F)
    return x_out, x_frontend


def init_params(key):
    k1, k2, k3, k4 = jax.random.split(key, 4)
    w1 = jax.random.normal(k1, (D_IN, HIDDEN), jnp.float32) * (1.0 / jnp.sqrt(D_IN))
    b1 = jax.random.normal(k2, (HIDDEN,), jnp.float32) * 0.01
    w2 = jax.random.normal(k3, (HIDDEN, LOCAL_FEATURE_DIM), jnp.float32) * (1.0 / jnp.sqrt(HIDDEN))
    b2 = jax.random.normal(k4, (LOCAL_FEATURE_DIM,), jnp.float32) * 0.01
    p = jnp.full((1,), GEM_P_INIT, jnp.float32)
    return w1, b1, w2, b2, p


if __name__ == "__main__":
    key = jax.random.PRNGKey(0)
    kx, kp = jax.random.split(key)

    B = 2
    x = jax.random.normal(kx, (B, NUM_POINTS, D_IN), jnp.float32)     # (B, N, 3)
    w1, b1, w2, b2, p = init_params(kp)

    x_out, x_frontend = jax.jit(epn_gem_forward)(x, w1, b1, w2, b2, p)
    jax.block_until_ready((x_out, x_frontend))

    # pure-JAX reference (same math, natural layout)
    h_ref = jnp.maximum(jnp.einsum('bnd,dh->bnh', x, w1) + b1, 0.0)
    f_ref = jnp.einsum('bnh,hf->bnf', h_ref, w2) + b2
    c_ref = jnp.maximum(f_ref, GEM_EPS)
    gem_expect = jnp.mean(c_ref ** p[0], axis=1) ** (1.0 / p[0])

    assert x_out.shape == (B, LOCAL_FEATURE_DIM)
    assert x_frontend.shape == (B, NUM_POINTS, LOCAL_FEATURE_DIM)
    assert bool(jnp.all(jnp.isfinite(x_out))) and bool(jnp.all(jnp.isfinite(x_frontend)))
    assert bool(jnp.allclose(x_frontend, f_ref, rtol=1e-3, atol=1e-3))
    assert bool(jnp.allclose(x_out, gem_expect, rtol=1e-2, atol=1e-2))

    print("KERNEL_OK")
</pallas_src>

<mosaic_0001>
module attributes {stable_mosaic.version = 11 : i64} {
  func.func @epn_gem_kernel(%arg0: memref<256x3xf32, #tpu.memory_space<vmem>>, %arg1: memref<3x64xf32, #tpu.memory_space<vmem>>, %arg2: memref<1x64xf32, #tpu.memory_space<vmem>>, %arg3: memref<64x32xf32, #tpu.memory_space<vmem>>, %arg4: memref<1x32xf32, #tpu.memory_space<vmem>>, %arg5: memref<1xf32, #tpu.memory_space<smem>>, %arg6: memref<256x32xf32, #tpu.memory_space<vmem>>, %arg7: memref<2x32xf32, #tpu.memory_space<vmem>>) attributes {dimension_semantics = [], scalar_prefetch = 0 : i64, scratch_operands = 0 : i64, tpu.core_type = #tpu.core_type<tc>} {
    %c0 = arith.constant 0 : index
    %c0_0 = arith.constant 0 : index
    %0 = vector.load %arg0[%c0, %c0_0] : memref<256x3xf32, #tpu.memory_space<vmem>>, vector<256x3xf32>
    %c0_1 = arith.constant 0 : index
    %c0_2 = arith.constant 0 : index
    %1 = vector.load %arg1[%c0_1, %c0_2] : memref<3x64xf32, #tpu.memory_space<vmem>>, vector<3x64xf32>
    %2 = vector.extract_strided_slice %0 {offsets = [0, 0], sizes = [256, 1], strides = [1, 1]} : vector<256x3xf32> to vector<256x1xf32>
    %3 = vector.extract_strided_slice %1 {offsets = [0, 0], sizes = [1, 64], strides = [1, 1]} : vector<3x64xf32> to vector<1x64xf32>
    %4 = vector.broadcast %2 : vector<256x1xf32> to vector<256x64xf32>
    %5 = vector.broadcast %3 : vector<1x64xf32> to vector<256x64xf32>
    %6 = arith.mulf %4, %5 : vector<256x64xf32>
    %7 = vector.extract_strided_slice %0 {offsets = [0, 1], sizes = [256, 1], strides = [1, 1]} : vector<256x3xf32> to vector<256x1xf32>
    %8 = vector.extract_strided_slice %1 {offsets = [1, 0], sizes = [1, 64], strides = [1, 1]} : vector<3x64xf32> to vector<1x64xf32>
    %9 = vector.broadcast %7 : vector<256x1xf32> to vector<256x64xf32>
    %10 = vector.broadcast %8 : vector<1x64xf32> to vector<256x64xf32>
    %11 = arith.mulf %9, %10 : vector<256x64xf32>
    %12 = arith.addf %6, %11 : vector<256x64xf32>
    %13 = vector.extract_strided_slice %0 {offsets = [0, 2], sizes = [256, 1], strides = [1, 1]} : vector<256x3xf32> to vector<256x1xf32>
    %14 = vector.extract_strided_slice %1 {offsets = [2, 0], sizes = [1, 64], strides = [1, 1]} : vector<3x64xf32> to vector<1x64xf32>
    %15 = vector.broadcast %13 : vector<256x1xf32> to vector<256x64xf32>
    %16 = vector.broadcast %14 : vector<1x64xf32> to vector<256x64xf32>
    %17 = arith.mulf %15, %16 : vector<256x64xf32>
    %18 = arith.addf %12, %17 : vector<256x64xf32>
    %c0_3 = arith.constant 0 : index
    %c0_4 = arith.constant 0 : index
    %19 = vector.load %arg2[%c0_3, %c0_4] : memref<1x64xf32, #tpu.memory_space<vmem>>, vector<1x64xf32>
    %20 = vector.broadcast %19 : vector<1x64xf32> to vector<256x64xf32>
    %21 = arith.addf %18, %20 : vector<256x64xf32>
    %cst = arith.constant 0.000000e+00 : f32
    %22 = vector.broadcast %cst : f32 to vector<256x64xf32>
    %23 = arith.maximumf %21, %22 : vector<256x64xf32>
    %c0_5 = arith.constant 0 : index
    %c0_6 = arith.constant 0 : index
    %24 = vector.load %arg3[%c0_5, %c0_6] : memref<64x32xf32, #tpu.memory_space<vmem>>, vector<64x32xf32>
    %cst_7 = arith.constant dense<0.000000e+00> : vector<256x32xf32>
    %25 = tpu.matmul %23, %24, %cst_7 {dimension_numbers = #tpu.dot_dimension_numbers<[1], [0], [0], [1], [0, 0, 1, 1], [], []>} : vector<256x64xf32>, vector<64x32xf32>, vector<256x32xf32> -> vector<256x32xf32>
    %c0_8 = arith.constant 0 : index
    %c0_9 = arith.constant 0 : index
    %26 = vector.load %arg4[%c0_8, %c0_9] : memref<1x32xf32, #tpu.memory_space<vmem>>, vector<1x32xf32>
    %27 = vector.broadcast %26 : vector<1x32xf32> to vector<256x32xf32>
    %28 = arith.addf %25, %27 : vector<256x32xf32>
    %c0_10 = arith.constant 0 : index
    %c0_11 = arith.constant 0 : index
    %29 = vector.load %arg6[%c0_10, %c0_11] : memref<256x32xf32, #tpu.memory_space<vmem>>, vector<256x32xf32>
    tpu.vector_store %arg6[%c0_10, %c0_11], %28 {strides = array<i32>} : memref<256x32xf32, #tpu.memory_space<vmem>>, vector<256x32xf32>,
    %c0_12 = arith.constant 0 : index
    %30 = memref.load %arg5[%c0_12] : memref<1xf32, #tpu.memory_space<smem>>
    %cst_13 = arith.constant 1.000000e+00 : f32
    %31 = arith.divf %cst_13, %30 : f32
    %cst_14 = arith.constant 9.99999997E-7 : f32
    %32 = vector.broadcast %cst_14 : f32 to vector<256x32xf32>
    %33 = arith.maximumf %28, %32 : vector<256x32xf32>
    %34 = math.log %33 : vector<256x32xf32>
    %35 = vector.broadcast %30 : f32 to vector<256x32xf32>
    %36 = arith.mulf %35, %34 : vector<256x32xf32>
    %37 = math.exp %36 : vector<256x32xf32>
    %38 = vector.extract_strided_slice %37 {offsets = [0, 0], sizes = [128, 32], strides = [1, 1]} : vector<256x32xf32> to vector<128x32xf32>
    %cst_15 = arith.constant dense<0.000000e+00> : vector<32xf32>
    %39 = vector.multi_reduction <add>, %38, %cst_15 [0] : vector<128x32xf32> to vector<32xf32>
    %40 = vector.shape_cast %39 : vector<32xf32> to vector<1x32xf32>
    %cst_16 = arith.constant 1.280000e+02 : f32
    %41 = vector.broadcast %cst_16 : f32 to vector<1x32xf32>
    %42 = arith.divf %40, %41 : vector<1x32xf32>
    %43 = vector.extract_strided_slice %37 {offsets = [128, 0], sizes = [128, 32], strides = [1, 1]} : vector<256x32xf32> to vector<128x32xf32>
    %cst_17 = arith.constant dense<0.000000e+00> : vector<32xf32>
    %44 = vector.multi_reduction <add>, %43, %cst_17 [0] : vector<128x32xf32> to vector<32xf32>
    %45 = vector.shape_cast %44 : vector<32xf32> to vector<1x32xf32>
    %cst_18 = arith.constant 1.280000e+02 : f32
    %46 = vector.broadcast %cst_18 : f32 to vector<1x32xf32>
    %47 = arith.divf %45, %46 : vector<1x32xf32>
    %48 = tpu.concatenate %42, %47 in 0 : vector<1x32xf32>, vector<1x32xf32> -> vector<2x32xf32>
    %49 = math.log %48 : vector<2x32xf32>
    %50 = vector.broadcast %31 : f32 to vector<2x32xf32>
    %51 = arith.mulf %49, %50 : vector<2x32xf32>
    %52 = math.exp %51 : vector<2x32xf32>
    %c0_19 = arith.constant 0 : index
    %c0_20 = arith.constant 0 : index
    %53 = vector.load %arg7[%c0_19, %c0_20] : memref<2x32xf32, #tpu.memory_space<vmem>>, vector<2x32xf32>
    tpu.vector_store %arg7[%c0_19, %c0_20], %52 {strides = array<i32>} : memref<2x32xf32, #tpu.memory_space<vmem>>, vector<2x32xf32>,
    return
  }
}

</mosaic_0001>

<llo_original>
// kernel: epn_gem_forward.1
$region0: #{epn_gem_forward.1}
  #allocation0 [shape = 'u32[]', space=smem, size = 0x4, offset = 0x4, fixed_abs, tag = 'smem constant byte address 0x4 - core index']
  #allocation1 [shape = 'u32[144,128]{1,0:T(1,128)}', space=vmem, size = 0x12000, scoped, tag = 'internal scratch']
  #allocation2 [shape = 'f32[1]{0:T(128)S(6)}', space=smem, size = 0x200, scoped, tag = 'scoped memory for epn_gem_forward.1']
  %s0 = inlined_call_operand.vmem [shape: f32[256,3], index: 0, kind: input, shape index: {}]
  %s1 = inlined_call_operand.vmem [shape: f32[3,64], index: 1, kind: input, shape index: {}]
  %s2 = inlined_call_operand.vmem [shape: f32[1,64], index: 2, kind: input, shape index: {}]
  %s3 = inlined_call_operand.vmem [shape: f32[64,32], index: 3, kind: input, shape index: {}]
  %s4 = inlined_call_operand.vmem [shape: f32[1,32], index: 4, kind: input, shape index: {}]
  %s5 = inlined_call_operand.<no memory space> [shape: f32[1], index: 5, kind: input, shape index: {}]
  %s6 = inlined_call_operand.vmem [shape: f32[256,32], index: 6, kind: output, shape index: {0}]
  %s7 = inlined_call_operand.hbm [shape: f32[2,32], index: 7, kind: output, shape index: {1}]
  %8 = xla_tuple %s6, %s7
  %s9 = sld [smem:[#allocation0]]
  $region42: #{epn_gem_forward.1} parent=0
    _
  %s11 = ssub.s32 1, %s9
  %s12 = scalar_select 0, %s11, %s9
  %13 = sst [smem:[#allocation2]] %s5
  $region1: #{epn_gem_forward.1} parent=0
    #allocation3 [shape = 'u8[1024]{0}', space=vmem, size = 0x400, scoped, tag = 'output window, operand 1, single buffered']
    #allocation4 [shape = 's32[1]{0}', space=sflag, size = 0x4, scoped, tag = 'scoped memory for epn_gem_forward.1']
    %14 = vsyncpa [#allocation4], 0
    // Predicated region
    $region2: #{epn_gem_forward.1} parent=1 // pred_check
      _
    $region3: #{epn_gem_forward.1} parent=1 // pred_check_branch
      %16 = sbr.rel (0) target = $region5
    $region4: #{epn_gem_forward.1} parent=1 // pred_region
      _
    $region5: #{epn_gem_forward.1} parent=1 // pred_fallthru
      _
    // Predicated region
    $region6: #{epn_gem_forward.1} parent=1 // pred_check
      _
    $region7: #{epn_gem_forward.1} parent=1 // pred_check_branch
      %18 = sbr.rel (0) target = $region9
    $region8: #{epn_gem_forward.1} parent=1 // pred_region
      _
    $region9: #{epn_gem_forward.1} parent=1 // pred_fallthru
      _
    // Predicated region
    $region10: #{epn_gem_forward.1} parent=1 // pred_check
      _
    $region11: #{epn_gem_forward.1} parent=1 // pred_check_branch
      %20 = sbr.rel (0) target = $region13
    $region12: #{epn_gem_forward.1} parent=1 // pred_region
      _
    $region13: #{epn_gem_forward.1} parent=1 // pred_fallthru
      _
    // Predicated region
    $region14: #{epn_gem_forward.1} parent=1 // pred_check
      _
    $region15: #{epn_gem_forward.1} parent=1 // pred_check_branch
      %22 = sbr.rel (0) target = $region17
    $region16: #{epn_gem_forward.1} parent=1 // pred_region
      _
    $region17: #{epn_gem_forward.1} parent=1 // pred_fallthru
      _
    // Predicated region
    $region18: #{epn_gem_forward.1} parent=1 // pred_check
      _
    $region19: #{epn_gem_forward.1} parent=1 // pred_check_branch
      %24 = sbr.rel (0) target = $region21
    $region20: #{epn_gem_forward.1} parent=1 // pred_region
      _
    $region21: #{epn_gem_forward.1} parent=1 // pred_fallthru
      _
    // Predicated region
    $region22: #{epn_gem_forward.1} parent=1 // pred_check
      _
    $region23: #{epn_gem_forward.1} parent=1 // pred_check_branch
      %26 = sbr.rel (0) target = $region25
    $region24: #{epn_gem_forward.1} parent=1 // pred_region
      _
    $region25: #{epn_gem_forward.1} parent=1 // pred_fallthru
      _
    %v27 = vld [vmem:[%s0] sm:$0xff]
    %v28 = vld [vmem:[%s0 + $0x8] sm:$0xff]
    %v29 = vld [vmem:[%s0 + $0x10] sm:$0xff]
    %v30 = vld [vmem:[%s0 + $0x18] sm:$0xff]
    %v31 = vld [vmem:[%s0 + $0x20] sm:$0xff]
    %v32 = vld [vmem:[%s0 + $0x28] sm:$0xff]
    %v33 = vld [vmem:[%s0 + $0x30] sm:$0xff]
    %v34 = vld [vmem:[%s0 + $0x38] sm:$0xff]
    %v35 = vld [vmem:[%s0 + $0x40] sm:$0xff]
    %v36 = vld [vmem:[%s0 + $0x48] sm:$0xff]
    %v37 = vld [vmem:[%s0 + $0x50] sm:$0xff]
    %v38 = vld [vmem:[%s0 + $0x58] sm:$0xff]
    %v39 = vld [vmem:[%s0 + $0x60] sm:$0xff]
    %v40 = vld [vmem:[%s0 + $0x68] sm:$0xff]
    %v41 = vld [vmem:[%s0 + $0x70] sm:$0xff]
    %v42 = vld [vmem:[%s0 + $0x78] sm:$0xff]
    %v43 = vld [vmem:[%s0 + $0x80] sm:$0xff]
    %v44 = vld [vmem:[%s0 + $0x88] sm:$0xff]
    %v45 = vld [vmem:[%s0 + $0x90] sm:$0xff]
    %v46 = vld [vmem:[%s0 + $0x98] sm:$0xff]
    %v47 = vld [vmem:[%s0 + $0xa0] sm:$0xff]
    %v48 = vld [vmem:[%s0 + $0xa8] sm:$0xff]
    %v49 = vld [vmem:[%s0 + $0xb0] sm:$0xff]
    %v50 = vld [vmem:[%s0 + $0xb8] sm:$0xff]
    %v51 = vld [vmem:[%s0 + $0xc0] sm:$0xff]
    %v52 = vld [vmem:[%s0 + $0xc8] sm:$0xff]
    %v53 = vld [vmem:[%s0 + $0xd0] sm:$0xff]
    %v54 = vld [vmem:[%s0 + $0xd8] sm:$0xff]
    %v55 = vld [vmem:[%s0 + $0xe0] sm:$0xff]
    %v56 = vld [vmem:[%s0 + $0xe8] sm:$0xff]
    %v57 = vld [vmem:[%s0 + $0xf0] sm:$0xff]
    %v58 = vld [vmem:[%s0 + $0xf8] sm:$0xff]
    %v59 = vld [vmem:[%s1] sm:$0x7]
    %61 = vset.pattern.permute.xlu0 0
    %62 = vperm.xlu0 %61, %v27
    %v63 = vpop.permute.xlu0 %62
    %66 = vset.pattern.permute.xlu0 0
    %67 = vperm.xlu0 %66, %v28
    %v68 = vpop.permute.xlu0 %67
    %71 = vset.pattern.permute.xlu0 0
    %72 = vperm.xlu0 %71, %v29
    %v73 = vpop.permute.xlu0 %72
    %76 = vset.pattern.permute.xlu0 0
    %77 = vperm.xlu0 %76, %v30
    %v78 = vpop.permute.xlu0 %77
    %81 = vset.pattern.permute.xlu0 0
    %82 = vperm.xlu0 %81, %v31
    %v83 = vpop.permute.xlu0 %82
    %86 = vset.pattern.permute.xlu0 0
    %87 = vperm.xlu0 %86, %v32
    %v88 = vpop.permute.xlu0 %87
    %91 = vset.pattern.permute.xlu0 0
    %92 = vperm.xlu0 %91, %v33
    %v93 = vpop.permute.xlu0 %92
    %96 = vset.pattern.permute.xlu0 0
    %97 = vperm.xlu0 %96, %v34
    %v98 = vpop.permute.xlu0 %97
    %101 = vset.pattern.permute.xlu0 0
    %102 = vperm.xlu0 %101, %v35
    %v103 = vpop.permute.xlu0 %102
    %106 = vset.pattern.permute.xlu0 0
    %107 = vperm.xlu0 %106, %v36
    %v108 = vpop.permute.xlu0 %107
    %111 = vset.pattern.permute.xlu0 0
    %112 = vperm.xlu0 %111, %v37
    %v113 = vpop.permute.xlu0 %112
    %116 = vset.pattern.permute.xlu0 0
    %117 = vperm.xlu0 %116, %v38
    %v118 = vpop.permute.xlu0 %117
    %121 = vset.pattern.permute.xlu0 0
    %122 = vperm.xlu0 %121, %v39
    %v123 = vpop.permute.xlu0 %122
    %126 = vset.pattern.permute.xlu0 0
    %127 = vperm.xlu0 %126, %v40
    %v128 = vpop.permute.xlu0 %127
    %131 = vset.pattern.permute.xlu0 0
    %132 = vperm.xlu0 %131, %v41
    %v133 = vpop.permute.xlu0 %132
    %136 = vset.pattern.permute.xlu0 0
    %137 = vperm.xlu0 %136, %v42
    %v138 = vpop.permute.xlu0 %137
    %141 = vset.pattern.permute.xlu0 0
    %142 = vperm.xlu0 %141, %v43
    %v143 = vpop.permute.xlu0 %142
    %146 = vset.pattern.permute.xlu0 0
    %147 = vperm.xlu0 %146, %v44
    %v148 = vpop.permute.xlu0 %147
    %151 = vset.pattern.permute.xlu0 0
    %152 = vperm.xlu0 %151, %v45
    %v153 = vpop.permute.xlu0 %152
    %156 = vset.pattern.permute.xlu0 0
    %157 = vperm.xlu0 %156, %v46
    %v158 = vpop.permute.xlu0 %157
    %161 = vset.pattern.permute.xlu0 0
    %162 = vperm.xlu0 %161, %v47
    %v163 = vpop.permute.xlu0 %162
    %166 = vset.pattern.permute.xlu0 0
    %167 = vperm.xlu0 %166, %v48
    %v168 = vpop.permute.xlu0 %167
    %171 = vset.pattern.permute.xlu0 0
    %172 = vperm.xlu0 %171, %v49
    %v173 = vpop.permute.xlu0 %172
    %176 = vset.pattern.permute.xlu0 0
    %177 = vperm.xlu0 %176, %v50
    %v178 = vpop.permute.xlu0 %177
    %181 = vset.pattern.permute.xlu0 0
    %182 = vperm.xlu0 %181, %v51
    %v183 = vpop.permute.xlu0 %182
    %186 = vset.pattern.permute.xlu0 0
    %187 = vperm.xlu0 %186, %v52
    %v188 = vpop.permute.xlu0 %187
    %191 = vset.pattern.permute.xlu0 0
    %192 = vperm.xlu0 %191, %v53
    %v193 = vpop.permute.xlu0 %192
    %196 = vset.pattern.permute.xlu0 0
    %197 = vperm.xlu0 %196, %v54
    %v198 = vpop.permute.xlu0 %197
    %201 = vset.pattern.permute.xlu0 0
    %202 = vperm.xlu0 %201, %v55
    %v203 = vpop.permute.xlu0 %202
    %206 = vset.pattern.permute.xlu0 0
    %207 = vperm.xlu0 %206, %v56
    %v208 = vpop.permute.xlu0 %207
    %211 = vset.pattern.permute.xlu0 0
    %212 = vperm.xlu0 %211, %v57
    %v213 = vpop.permute.xlu0 %212
    %216 = vset.pattern.permute.xlu0 0
    %217 = vperm.xlu0 %216, %v58
    %v218 = vpop.permute.xlu0 %217
    %v220 = vlaneseq
    %v221 = vshrl.u32 %v220, 7
    %v222 = vsub.s32 0, %v221
    %v223 = vrot.slane %v59, %v222
    %v224 = vmul.f32 %v63, %v223
    %v225 = vmul.f32 %v68, %v223
    %v226 = vmul.f32 %v73, %v223
    %v227 = vmul.f32 %v78, %v223
    %v228 = vmul.f32 %v83, %v223
    %v229 = vmul.f32 %v88, %v223
    %v230 = vmul.f32 %v93, %v223
    %v231 = vmul.f32 %v98, %v223
    %v232 = vmul.f32 %v103, %v223
    %v233 = vmul.f32 %v108, %v223
    %v234 = vmul.f32 %v113, %v223
    %v235 = vmul.f32 %v118, %v223
    %v236 = vmul.f32 %v123, %v223
    %v237 = vmul.f32 %v128, %v223
    %v238 = vmul.f32 %v133, %v223
    %v239 = vmul.f32 %v138, %v223
    %v240 = vmul.f32 %v143, %v223
    %v241 = vmul.f32 %v148, %v223
    %v242 = vmul.f32 %v153, %v223
    %v243 = vmul.f32 %v158, %v223
    %v244 = vmul.f32 %v163, %v223
    %v245 = vmul.f32 %v168, %v223
    %v246 = vmul.f32 %v173, %v223
    %v247 = vmul.f32 %v178, %v223
    %v248 = vmul.f32 %v183, %v223
    %v249 = vmul.f32 %v188, %v223
    %v250 = vmul.f32 %v193, %v223
    %v251 = vmul.f32 %v198, %v223
    %v252 = vmul.f32 %v203, %v223
    %v253 = vmul.f32 %v208, %v223
    %v254 = vmul.f32 %v213, %v223
    %v255 = vmul.f32 %v218, %v223
    %256 = vset.pattern.permute.xlu0 1
    %257 = vperm.xlu0 %256, %v27
    %v258 = vpop.permute.xlu0 %257
    %260 = vset.pattern.permute.xlu0 1
    %261 = vperm.xlu0 %260, %v28
    %v262 = vpop.permute.xlu0 %261
    %264 = vset.pattern.permute.xlu0 1
    %265 = vperm.xlu0 %264, %v29
    %v266 = vpop.permute.xlu0 %265
    %268 = vset.pattern.permute.xlu0 1
    %269 = vperm.xlu0 %268, %v30
    %v270 = vpop.permute.xlu0 %269
    %272 = vset.pattern.permute.xlu0 1
    %273 = vperm.xlu0 %272, %v31
    %v274 = vpop.permute.xlu0 %273
    %276 = vset.pattern.permute.xlu0 1
    %277 = vperm.xlu0 %276, %v32
    %v278 = vpop.permute.xlu0 %277
    %280 = vset.pattern.permute.xlu0 1
    %281 = vperm.xlu0 %280, %v33
    %v282 = vpop.permute.xlu0 %281
    %284 = vset.pattern.permute.xlu0 1
    %285 = vperm.xlu0 %284, %v34
    %v286 = vpop.permute.xlu0 %285
    %288 = vset.pattern.permute.xlu0 1
    %289 = vperm.xlu0 %288, %v35
    %v290 = vpop.permute.xlu0 %289
    %292 = vset.pattern.permute.xlu0 1
    %293 = vperm.xlu0 %292, %v36
    %v294 = vpop.permute.xlu0 %293
    %296 = vset.pattern.permute.xlu0 1
    %297 = vperm.xlu0 %296, %v37
    %v298 = vpop.permute.xlu0 %297
    %300 = vset.pattern.permute.xlu0 1
    %301 = vperm.xlu0 %300, %v38
    %v302 = vpop.permute.xlu0 %301
    %304 = vset.pattern.permute.xlu0 1
    %305 = vperm.xlu0 %304, %v39
    %v306 = vpop.permute.xlu0 %305
    %308 = vset.pattern.permute.xlu0 1
    %309 = vperm.xlu0 %308, %v40
    %v310 = vpop.permute.xlu0 %309
    %312 = vset.pattern.permute.xlu0 1
    %313 = vperm.xlu0 %312, %v41
    %v314 = vpop.permute.xlu0 %313
    %316 = vset.pattern.permute.xlu0 1
    %317 = vperm.xlu0 %316, %v42
    %v318 = vpop.permute.xlu0 %317
    %320 = vset.pattern.permute.xlu0 1
    %321 = vperm.xlu0 %320, %v43
    %v322 = vpop.permute.xlu0 %321
    %324 = vset.pattern.permute.xlu0 1
    %325 = vperm.xlu0 %324, %v44
    %v326 = vpop.permute.xlu0 %325
    %328 = vset.pattern.permute.xlu0 1
    %329 = vperm.xlu0 %328, %v45
    %v330 = vpop.permute.xlu0 %329
    %332 = vset.pattern.permute.xlu0 1
    %333 = vperm.xlu0 %332, %v46
    %v334 = vpop.permute.xlu0 %333
    %336 = vset.pattern.permute.xlu0 1
    %337 = vperm.xlu0 %336, %v47
    %v338 = vpop.permute.xlu0 %337
    %340 = vset.pattern.permute.xlu0 1
    %341 = vperm.xlu0 %340, %v48
    %v342 = vpop.permute.xlu0 %341
    %344 = vset.pattern.permute.xlu0 1
    %345 = vperm.xlu0 %344, %v49
    %v346 = vpop.permute.xlu0 %345
    %348 = vset.pattern.permute.xlu0 1
    %349 = vperm.xlu0 %348, %v50
    %v350 = vpop.permute.xlu0 %349
    %352 = vset.pattern.permute.xlu0 1
    %353 = vperm.xlu0 %352, %v51
    %v354 = vpop.permute.xlu0 %353
    %356 = vset.pattern.permute.xlu0 1
    %357 = vperm.xlu0 %356, %v52
    %v358 = vpop.permute.xlu0 %357
    %360 = vset.pattern.permute.xlu0 1
    %361 = vperm.xlu0 %360, %v53
    %v362 = vpop.permute.xlu0 %361
    %364 = vset.pattern.permute.xlu0 1
    %365 = vperm.xlu0 %364, %v54
    %v366 = vpop.permute.xlu0 %365
    %368 = vset.pattern.permute.xlu0 1
    %369 = vperm.xlu0 %368, %v55
    %v370 = vpop.permute.xlu0 %369
    %372 = vset.pattern.permute.xlu0 1
    %373 = vperm.xlu0 %372, %v56
    %v374 = vpop.permute.xlu0 %373
    %376 = vset.pattern.permute.xlu0 1
    %377 = vperm.xlu0 %376, %v57
    %v378 = vpop.permute.xlu0 %377
    %380 = vset.pattern.permute.xlu0 1
    %381 = vperm.xlu0 %380, %v58
    %v382 = vpop.permute.xlu0 %381
    %v384 = vlaneseq
    %v385 = vshrl.u32 %v384, 7
    %v386 = vsub.s32 1, %v385
    %v387 = vrot.slane %v59, %v386
    %v388 = vmul.f32 %v258, %v387
    %v389 = vmul.f32 %v262, %v387
    %v390 = vmul.f32 %v266, %v387
    %v391 = vmul.f32 %v270, %v387
    %v392 = vmul.f32 %v274, %v387
    %v393 = vmul.f32 %v278, %v387
    %v394 = vmul.f32 %v282, %v387
    %v395 = vmul.f32 %v286, %v387
    %v396 = vmul.f32 %v290, %v387
    %v397 = vmul.f32 %v294, %v387
    %v398 = vmul.f32 %v298, %v387
    %v399 = vmul.f32 %v302, %v387
    %v400 = vmul.f32 %v306, %v387
    %v401 = vmul.f32 %v310, %v387
    %v402 = vmul.f32 %v314, %v387
    %v403 = vmul.f32 %v318, %v387
    %v404 = vmul.f32 %v322, %v387
    %v405 = vmul.f32 %v326, %v387
    %v406 = vmul.f32 %v330, %v387
    %v407 = vmul.f32 %v334, %v387
    %v408 = vmul.f32 %v338, %v387
    %v409 = vmul.f32 %v342, %v387
    %v410 = vmul.f32 %v346, %v387
    %v411 = vmul.f32 %v350, %v387
    %v412 = vmul.f32 %v354, %v387
    %v413 = vmul.f32 %v358, %v387
    %v414 = vmul.f32 %v362, %v387
    %v415 = vmul.f32 %v366, %v387
    %v416 = vmul.f32 %v370, %v387
    %v417 = vmul.f32 %v374, %v387
    %v418 = vmul.f32 %v378, %v387
    %v419 = vmul.f32 %v382, %v387
    %v420 = vadd.f32 %v224, %v388
    %v421 = vadd.f32 %v225, %v389
    %v422 = vadd.f32 %v226, %v390
    %v423 = vadd.f32 %v227, %v391
    %v424 = vadd.f32 %v228, %v392
    %v425 = vadd.f32 %v229, %v393
    %v426 = vadd.f32 %v230, %v394
    %v427 = vadd.f32 %v231, %v395
    %v428 = vadd.f32 %v232, %v396
    %v429 = vadd.f32 %v233, %v397
    %v430 = vadd.f32 %v234, %v398
    %v431 = vadd.f32 %v235, %v399
    %v432 = vadd.f32 %v236, %v400
    %v433 = vadd.f32 %v237, %v401
    %v434 = vadd.f32 %v238, %v402
    %v435 = vadd.f32 %v239, %v403
    %v436 = vadd.f32 %v240, %v404
    %v437 = vadd.f32 %v241, %v405
    %v438 = vadd.f32 %v242, %v406
    %v439 = vadd.f32 %v243, %v407
    %v440 = vadd.f32 %v244, %v408
    %v441 = vadd.f32 %v245, %v409
    %v442 = vadd.f32 %v246, %v410
    %v443 = vadd.f32 %v247, %v411
    %v444 = vadd.f32 %v248, %v412
    %v445 = vadd.f32 %v249, %v413
    %v446 = vadd.f32 %v250, %v414
    %v447 = vadd.f32 %v251, %v415
    %v448 = vadd.f32 %v252, %v416
    %v449 = vadd.f32 %v253, %v417
    %v450 = vadd.f32 %v254, %v418
    %v451 = vadd.f32 %v255, %v419
    %452 = vset.pattern.permute.xlu0 2
    %453 = vperm.xlu0 %452, %v27
    %v454 = vpop.permute.xlu0 %453
    %456 = vset.pattern.permute.xlu0 2
    %457 = vperm.xlu0 %456, %v28
    %v458 = vpop.permute.xlu0 %457
    %460 = vset.pattern.permute.xlu0 2
    %461 = vperm.xlu0 %460, %v29
    %v462 = vpop.permute.xlu0 %461
    %464 = vset.pattern.permute.xlu0 2
    %465 = vperm.xlu0 %464, %v30
    %v466 = vpop.permute.xlu0 %465
    %468 = vset.pattern.permute.xlu0 2
    %469 = vperm.xlu0 %468, %v31
    %v470 = vpop.permute.xlu0 %469
    %472 = vset.pattern.permute.xlu0 2
    %473 = vperm.xlu0 %472, %v32
    %v474 = vpop.permute.xlu0 %473
    %476 = vset.pattern.permute.xlu0 2
    %477 = vperm.xlu0 %476, %v33
    %v478 = vpop.permute.xlu0 %477
    %480 = vset.pattern.permute.xlu0 2
    %481 = vperm.xlu0 %480, %v34
    %v482 = vpop.permute.xlu0 %481
    %484 = vset.pattern.permute.xlu0 2
    %485 = vperm.xlu0 %484, %v35
    %v486 = vpop.permute.xlu0 %485
    %488 = vset.pattern.permute.xlu0 2
    %489 = vperm.xlu0 %488, %v36
    %v490 = vpop.permute.xlu0 %489
    %492 = vset.pattern.permute.xlu0 2
    %493 = vperm.xlu0 %492, %v37
    %v494 = vpop.permute.xlu0 %493
    %496 = vset.pattern.permute.xlu0 2
    %497 = vperm.xlu0 %496, %v38
    %v498 = vpop.permute.xlu0 %497
    %500 = vset.pattern.permute.xlu0 2
    %501 = vperm.xlu0 %500, %v39
    %v502 = vpop.permute.xlu0 %501
    %504 = vset.pattern.permute.xlu0 2
    %505 = vperm.xlu0 %504, %v40
    %v506 = vpop.permute.xlu0 %505
    %508 = vset.pattern.permute.xlu0 2
    %509 = vperm.xlu0 %508, %v41
    %v510 = vpop.permute.xlu0 %509
    %512 = vset.pattern.permute.xlu0 2
    %513 = vperm.xlu0 %512, %v42
    %v514 = vpop.permute.xlu0 %513
    %516 = vset.pattern.permute.xlu0 2
    %517 = vperm.xlu0 %516, %v43
    %v518 = vpop.permute.xlu0 %517
    %520 = vset.pattern.permute.xlu0 2
    %521 = vperm.xlu0 %520, %v44
    %v522 = vpop.permute.xlu0 %521
    %524 = vset.pattern.permute.xlu0 2
    %525 = vperm.xlu0 %524, %v45
    %v526 = vpop.permute.xlu0 %525
    %528 = vset.pattern.permute.xlu0 2
    %529 = vperm.xlu0 %528, %v46
    %v530 = vpop.permute.xlu0 %529
    %532 = vset.pattern.permute.xlu0 2
    %533 = vperm.xlu0 %532, %v47
    %v534 = vpop.permute.xlu0 %533
    %536 = vset.pattern.permute.xlu0 2
    %537 = vperm.xlu0 %536, %v48
    %v538 = vpop.permute.xlu0 %537
    %540 = vset.pattern.permute.xlu0 2
    %541 = vperm.xlu0 %540, %v49
    %v542 = vpop.permute.xlu0 %541
    %544 = vset.pattern.permute.xlu0 2
    %545 = vperm.xlu0 %544, %v50
    %v546 = vpop.permute.xlu0 %545
    %548 = vset.pattern.permute.xlu0 2
    %549 = vperm.xlu0 %548, %v51
    %v550 = vpop.permute.xlu0 %549
    %552 = vset.pattern.permute.xlu0 2
    %553 = vperm.xlu0 %552, %v52
    %v554 = vpop.permute.xlu0 %553
    %556 = vset.pattern.permute.xlu0 2
    %557 = vperm.xlu0 %556, %v53
    %v558 = vpop.permute.xlu0 %557
    %560 = vset.pattern.permute.xlu0 2
    %561 = vperm.xlu0 %560, %v54
    %v562 = vpop.permute.xlu0 %561
    %564 = vset.pattern.permute.xlu0 2
    %565 = vperm.xlu0 %564, %v55
    %v566 = vpop.permute.xlu0 %565
    %568 = vset.pattern.permute.xlu0 2
    %569 = vperm.xlu0 %568, %v56
    %v570 = vpop.permute.xlu0 %569
    %572 = vset.pattern.permute.xlu0 2
    %573 = vperm.xlu0 %572, %v57
    %v574 = vpop.permute.xlu0 %573
    %576 = vset.pattern.permute.xlu0 2
    %577 = vperm.xlu0 %576, %v58
    %v578 = vpop.permute.xlu0 %577
    %v580 = vlaneseq
    %v581 = vshrl.u32 %v580, 7
    %v582 = vsub.s32 2, %v581
    %v583 = vrot.slane %v59, %v582
    %v584 = vmul.f32 %v454, %v583
    %v585 = vmul.f32 %v458, %v583
    %v586 = vmul.f32 %v462, %v583
    %v587 = vmul.f32 %v466, %v583
    %v588 = vmul.f32 %v470, %v583
    %v589 = vmul.f32 %v474, %v583
    %v590 = vmul.f32 %v478, %v583
    %v591 = vmul.f32 %v482, %v583
    %v592 = vmul.f32 %v486, %v583
    %v593 = vmul.f32 %v490, %v583
    %v594 = vmul.f32 %v494, %v583
    %v595 = vmul.f32 %v498, %v583
    %v596 = vmul.f32 %v502, %v583
    %v597 = vmul.f32 %v506, %v583
    %v598 = vmul.f32 %v510, %v583
    %v599 = vmul.f32 %v514, %v583
    %v600 = vmul.f32 %v518, %v583
    %v601 = vmul.f32 %v522, %v583
    %v602 = vmul.f32 %v526, %v583
    %v603 = vmul.f32 %v530, %v583
    %v604 = vmul.f32 %v534, %v583
    %v605 = vmul.f32 %v538, %v583
    %v606 = vmul.f32 %v542, %v583
    %v607 = vmul.f32 %v546, %v583
    %v608 = vmul.f32 %v550, %v583
    %v609 = vmul.f32 %v554, %v583
    %v610 = vmul.f32 %v558, %v583
    %v611 = vmul.f32 %v562, %v583
    %v612 = vmul.f32 %v566, %v583
    %v613 = vmul.f32 %v570, %v583
    %v614 = vmul.f32 %v574, %v583
    %v615 = vmul.f32 %v578, %v583
    %v616 = vadd.f32 %v420, %v584
    %v617 = vadd.f32 %v421, %v585
    %v618 = vadd.f32 %v422, %v586
    %v619 = vadd.f32 %v423, %v587
    %v620 = vadd.f32 %v424, %v588
    %v621 = vadd.f32 %v425, %v589
    %v622 = vadd.f32 %v426, %v590
    %v623 = vadd.f32 %v427, %v591
    %v624 = vadd.f32 %v428, %v592
    %v625 = vadd.f32 %v429, %v593
    %v626 = vadd.f32 %v430, %v594
    %v627 = vadd.f32 %v431, %v595
    %v628 = vadd.f32 %v432, %v596
    %v629 = vadd.f32 %v433, %v597
    %v630 = vadd.f32 %v434, %v598
    %v631 = vadd.f32 %v435, %v599
    %v632 = vadd.f32 %v436, %v600
    %v633 = vadd.f32 %v437, %v601
    %v634 = vadd.f32 %v438, %v602
    %v635 = vadd.f32 %v439, %v603
    %v636 = vadd.f32 %v440, %v604
    %v637 = vadd.f32 %v441, %v605
    %v638 = vadd.f32 %v442, %v606
    %v639 = vadd.f32 %v443, %v607
    %v640 = vadd.f32 %v444, %v608
    %v641 = vadd.f32 %v445, %v609
    %v642 = vadd.f32 %v446, %v610
    %v643 = vadd.f32 %v447, %v611
    %v644 = vadd.f32 %v448, %v612
    %v645 = vadd.f32 %v449, %v613
    %v646 = vadd.f32 %v450, %v614
    %v647 = vadd.f32 %v451, %v615
    %v648 = vld [vmem:[%s2] sm:$0x1]
    %v650 = vlaneseq
    %v651 = vshrl.u32 %v650, 7
    %v652 = vsub.s32 0, %v651
    %v653 = vrot.slane %v648, %v652
    %v655 = vadd.f32 %v616, %v653
    %v656 = vadd.f32 %v617, %v653
    %v657 = vadd.f32 %v618, %v653
    %v658 = vadd.f32 %v619, %v653
    %v659 = vadd.f32 %v620, %v653
    %v660 = vadd.f32 %v621, %v653
    %v661 = vadd.f32 %v622, %v653
    %v662 = vadd.f32 %v623, %v653
    %v663 = vadd.f32 %v624, %v653
    %v664 = vadd.f32 %v625, %v653
    %v665 = vadd.f32 %v626, %v653
    %v666 = vadd.f32 %v627, %v653
    %v667 = vadd.f32 %v628, %v653
    %v668 = vadd.f32 %v629, %v653
    %v669 = vadd.f32 %v630, %v653
    %v670 = vadd.f32 %v631, %v653
    %v671 = vadd.f32 %v632, %v653
    %v672 = vadd.f32 %v633, %v653
    %v673 = vadd.f32 %v634, %v653
    %v674 = vadd.f32 %v635, %v653
    %v675 = vadd.f32 %v636, %v653
    %v676 = vadd.f32 %v637, %v653
    %v677 = vadd.f32 %v638, %v653
    %v678 = vadd.f32 %v639, %v653
    %v679 = vadd.f32 %v640, %v653
    %v680 = vadd.f32 %v641, %v653
    %v681 = vadd.f32 %v642, %v653
    %v682 = vadd.f32 %v643, %v653
    %v683 = vadd.f32 %v644, %v653
    %v684 = vadd.f32 %v645, %v653
    %v685 = vadd.f32 %v646, %v653
    %v686 = vadd.f32 %v647, %v653
    %v687 = vmax.f32 %v655, 0.0
    %v688 = vmax.f32 %v656, 0.0
    %v689 = vmax.f32 %v657, 0.0
    %v690 = vmax.f32 %v658, 0.0
    %v691 = vmax.f32 %v659, 0.0
    %v692 = vmax.f32 %v660, 0.0
    %v693 = vmax.f32 %v661, 0.0
    %v694 = vmax.f32 %v662, 0.0
    %v695 = vmax.f32 %v663, 0.0
    %v696 = vmax.f32 %v664, 0.0
    %v697 = vmax.f32 %v665, 0.0
    %v698 = vmax.f32 %v666, 0.0
    %v699 = vmax.f32 %v667, 0.0
    %v700 = vmax.f32 %v668, 0.0
    %v701 = vmax.f32 %v669, 0.0
    %v702 = vmax.f32 %v670, 0.0
    %v703 = vmax.f32 %v671, 0.0
    %v704 = vmax.f32 %v672, 0.0
    %v705 = vmax.f32 %v673, 0.0
    %v706 = vmax.f32 %v674, 0.0
    %v707 = vmax.f32 %v675, 0.0
    %v708 = vmax.f32 %v676, 0.0
    %v709 = vmax.f32 %v677, 0.0
    %v710 = vmax.f32 %v678, 0.0
    %v711 = vmax.f32 %v679, 0.0
    %v712 = vmax.f32 %v680, 0.0
    %v713 = vmax.f32 %v681, 0.0
    %v714 = vmax.f32 %v682, 0.0
    %v715 = vmax.f32 %v683, 0.0
    %v716 = vmax.f32 %v684, 0.0
    %v717 = vmax.f32 %v685, 0.0
    %v718 = vmax.f32 %v686, 0.0
    %v719 = vld [vmem:[%s3] sm:$0xff]
    %v720 = vld [vmem:[%s3 + $0x8] sm:$0xff]
    %v721 = vld [vmem:[%s3 + $0x10] sm:$0xff]
    %v722 = vld [vmem:[%s3 + $0x18] sm:$0xff]
    %v723 = vld [vmem:[%s3 + $0x20] sm:$0xff]
    %v724 = vld [vmem:[%s3 + $0x28] sm:$0xff]
    %v725 = vld [vmem:[%s3 + $0x30] sm:$0xff]
    %v726 = vld [vmem:[%s3 + $0x38] sm:$0xff]
    %v727 = vld [vmem:[%s4] sm:$0x1]
    %v729 = vlaneseq
    %v730 = vshrl.u32 %v729, 7
    %v731 = vsub.s32 0, %v730
    %v732 = vrot.slane %v727, %v731
    %vm734 = vcmask 523264
    %v736 = vsel %vm734, %v687, 0
    %v739 = vsel %vm734, %v688, 0
    %v742 = vsel %vm734, %v689, 0
    %v745 = vsel %vm734, %v690, 0
    %v748 = vsel %vm734, %v691, 0
    %v751 = vsel %vm734, %v692, 0
    %v754 = vsel %vm734, %v693, 0
    %v757 = vsel %vm734, %v694, 0
    %v760 = vsel %vm734, %v695, 0
    %v763 = vsel %vm734, %v696, 0
    %v766 = vsel %vm734, %v697, 0
    %v769 = vsel %vm734, %v698, 0
    %v772 = vsel %vm734, %v699, 0
    %v775 = vsel %vm734, %v700, 0
    %v778 = vsel %vm734, %v701, 0
    %v781 = vsel %vm734, %v702, 0
    %v784 = vsel %vm734, %v703, 0
    %v787 = vsel %vm734, %v704, 0
    %v790 = vsel %vm734, %v705, 0
    %v793 = vsel %vm734, %v706, 0
    %v796 = vsel %vm734, %v707, 0
    %v799 = vsel %vm734, %v708, 0
    %v802 = vsel %vm734, %v709, 0
    %v805 = vsel %vm734, %v710, 0
    %v808 = vsel %vm734, %v711, 0
    %v811 = vsel %vm734, %v712, 0
    %v814 = vsel %vm734, %v713, 0
    %v817 = vsel %vm734, %v714, 0
    %v820 = vsel %vm734, %v715, 0
    %v823 = vsel %vm734, %v716, 0
    %v826 = vsel %vm734, %v717, 0
    %v829 = vsel %vm734, %v718, 0
    %831 = vmatprep.subr.mxu0 0.0
    %832 = vmatpush1.msra.mxu0 0.0
    %833 = vmatprep.subr.mxu0 0.0
    %834 = vmatpush1.msra.mxu0 0.0
    %835 = vmatprep.subr.mxu0 0.0
    %836 = vmatpush1.msra.mxu0 0.0
    %837 = vmatprep.subr.mxu0 0.0
    %838 = vmatpush1.msra.mxu0 0.0
    %839 = vmatprep.subr.mxu0 0.0
    %840 = vmatpush1.msra.mxu0 0.0
    %841 = vmatprep.subr.mxu0 0.0
    %842 = vmatpush1.msra.mxu0 0.0
    %843 = vmatprep.subr.mxu0 0.0
    %844 = vmatpush1.msra.mxu0 0.0
    %845 = vmatprep.subr.mxu0 0.0
    %846 = vmatpush1.msra.mxu0 0.0
    %847 = vmatprep.subr.mxu0 0.0
    %848 = vmatpush1.msra.mxu0 %v726
    %849 = vmatprep.subr.mxu0 0.0
    %850 = vmatpush1.msra.mxu0 %v725
    %851 = vmatprep.subr.mxu0 0.0
    %852 = vmatpush1.msra.mxu0 %v724
    %853 = vmatprep.subr.mxu0 0.0
    %854 = vmatpush1.msra.mxu0 %v723
    %855 = vmatprep.subr.mxu0 0.0
    %856 = vmatpush1.msra.mxu0 %v722
    %857 = vmatprep.subr.mxu0 0.0
    %858 = vmatpush1.msra.mxu0 %v721
    %859 = vmatprep.subr.mxu0 0.0
    %860 = vmatpush1.msra.mxu0 %v720
    %861 = vmatprep.subr.mxu0 0.0
    %862 = vmatpush1.msra.mxu0 %v719
    %863 = vmatprep.subr.mxu0 0.0
    %864 = vmatpush2.msra.mxu0 0.0
    %865 = vmatprep.subr.mxu0 0.0
    %866 = vmatpush2.msra.mxu0 0.0
    %867 = vmatprep.subr.mxu0 0.0
    %868 = vmatpush2.msra.mxu0 0.0
    %869 = vmatprep.subr.mxu0 0.0
    %870 = vmatpush2.msra.mxu0 0.0
    %871 = vmatprep.subr.mxu0 0.0
    %872 = vmatpush2.msra.mxu0 0.0
    %873 = vmatprep.subr.mxu0 0.0
    %874 = vmatpush2.msra.mxu0 0.0
    %875 = vmatprep.subr.mxu0 0.0
    %876 = vmatpush2.msra.mxu0 0.0
    %877 = vmatprep.subr.mxu0 0.0
    %878 = vmatpush2.msra.mxu0 0.0
    %879 = vmatprep.subr.mxu0 0.0
    %880 = vmatpush2.msra.mxu0 0.0
    %881 = vmatprep.subr.mxu0 0.0
    %882 = vmatpush2.msra.mxu0 0.0
    %883 = vmatprep.subr.mxu0 0.0
    %884 = vmatpush2.msra.mxu0 0.0
    %885 = vmatprep.subr.mxu0 0.0
    %886 = vmatpush2.msra.mxu0 0.0
    %887 = vmatprep.subr.mxu0 0.0
    %888 = vmatpush2.msra.mxu0 0.0
    %889 = vmatprep.subr.mxu0 0.0
    %890 = vmatpush2.msra.mxu0 0.0
    %891 = vmatprep.subr.mxu0 0.0
    %892 = vmatpush2.msra.mxu0 0.0
    %893 = vmatprep.subr.mxu0 0.0
    %894 = vmatpush2.msra.mxu0 0.0
    %895 = vmatprep.mubr.f32.mxu0 0.0
    %896 = vmatmul.mubr.f32.gmra.mxu0 %v736
    %v897 = vpop.f32.mrf.mxu0
    %v898 = vadd.f32 %v732, %v897
    %v899 = vpop.f32.mrf.mxu0
    %900 = vmatprep.mubr.f32.mxu0 0.0
    %901 = vmatmul.mubr.f32.gmra.mxu0 %v739
    %v902 = vpop.f32.mrf.mxu0
    %v903 = vadd.f32 %v732, %v902
    %v904 = vpop.f32.mrf.mxu0
    %905 = vmatprep.mubr.f32.mxu0 0.0
    %906 = vmatmul.mubr.f32.gmra.mxu0 %v742
    %v907 = vpop.f32.mrf.mxu0
    %v908 = vadd.f32 %v732, %v907
    %v909 = vpop.f32.mrf.mxu0
    %910 = vmatprep.mubr.f32.mxu0 0.0
    %911 = vmatmul.mubr.f32.gmra.mxu0 %v745
    %v912 = vpop.f32.mrf.mxu0
    %v913 = vadd.f32 %v732, %v912
    %v914 = vpop.f32.mrf.mxu0
    %915 = vmatprep.mubr.f32.mxu0 0.0
    %916 = vmatmul.mubr.f32.gmra.mxu0 %v748
    %v917 = vpop.f32.mrf.mxu0
    %v918 = vadd.f32 %v732, %v917
    %v919 = vpop.f32.mrf.mxu0
    %920 = vmatprep.mubr.f32.mxu0 0.0
    %921 = vmatmul.mubr.f32.gmra.mxu0 %v751
    %v922 = vpop.f32.mrf.mxu0
    %v923 = vadd.f32 %v732, %v922
    %v924 = vpop.f32.mrf.mxu0
    %925 = vmatprep.mubr.f32.mxu0 0.0
    %926 = vmatmul.mubr.f32.gmra.mxu0 %v754
    %v927 = vpop.f32.mrf.mxu0
    %v928 = vadd.f32 %v732, %v927
    %v929 = vpop.f32.mrf.mxu0
    %930 = vmatprep.mubr.f32.mxu0 0.0
    %931 = vmatmul.mubr.f32.gmra.mxu0 %v757
    %v932 = vpop.f32.mrf.mxu0
    %v933 = vadd.f32 %v732, %v932
    %v934 = vpop.f32.mrf.mxu0
    %935 = vmatprep.mubr.f32.mxu0 0.0
    %936 = vmatmul.mubr.f32.gmra.mxu0 %v760
    %v937 = vpop.f32.mrf.mxu0
    %v938 = vadd.f32 %v732, %v937
    %v939 = vpop.f32.mrf.mxu0
    %940 = vmatprep.mubr.f32.mxu0 0.0
    %941 = vmatmul.mubr.f32.gmra.mxu0 %v763
    %v942 = vpop.f32.mrf.mxu0
    %v943 = vadd.f32 %v732, %v942
    %v944 = vpop.f32.mrf.mxu0
    %945 = vmatprep.mubr.f32.mxu0 0.0
    %946 = vmatmul.mubr.f32.gmra.mxu0 %v766
    %v947 = vpop.f32.mrf.mxu0
    %v948 = vadd.f32 %v732, %v947
    %v949 = vpop.f32.mrf.mxu0
    %950 = vmatprep.mubr.f32.mxu0 0.0
    %951 = vmatmul.mubr.f32.gmra.mxu0 %v769
    %v952 = vpop.f32.mrf.mxu0
    %v953 = vadd.f32 %v732, %v952
    %v954 = vpop.f32.mrf.mxu0
    %955 = vmatprep.mubr.f32.mxu0 0.0
    %956 = vmatmul.mubr.f32.gmra.mxu0 %v772
    %v957 = vpop.f32.mrf.mxu0
    %v958 = vadd.f32 %v732, %v957
    %v959 = vpop.f32.mrf.mxu0
    %960 = vmatprep.mubr.f32.mxu0 0.0
    %961 = vmatmul.mubr.f32.gmra.mxu0 %v775
    %v962 = vpop.f32.mrf.mxu0
    %v963 = vadd.f32 %v732, %v962
    %v964 = vpop.f32.mrf.mxu0
    %965 = vmatprep.mubr.f32.mxu0 0.0
    %966 = vmatmul.mubr.f32.gmra.mxu0 %v778
    %v967 = vpop.f32.mrf.mxu0
    %v968 = vadd.f32 %v732, %v967
    %v969 = vpop.f32.mrf.mxu0
    %970 = vmatprep.mubr.f32.mxu0 0.0
    %971 = vmatmul.mubr.f32.gmra.mxu0 %v781
    %v972 = vpop.f32.mrf.mxu0
    %v973 = vadd.f32 %v732, %v972
    %v974 = vpop.f32.mrf.mxu0
    %975 = vmatprep.mubr.f32.mxu0 0.0
    %976 = vmatmul.mubr.f32.gmra.mxu0 %v784
    %v977 = vpop.f32.mrf.mxu0
    %v978 = vadd.f32 %v732, %v977
    %v979 = vpop.f32.mrf.mxu0
    %980 = vmatprep.mubr.f32.mxu0 0.0
    %981 = vmatmul.mubr.f32.gmra.mxu0 %v787
    %v982 = vpop.f32.mrf.mxu0
    %v983 = vadd.f32 %v732, %v982
    %v984 = vpop.f32.mrf.mxu0
    %985 = vmatprep.mubr.f32.mxu0 0.0
    %986 = vmatmul.mubr.f32.gmra.mxu0 %v790
    %v987 = vpop.f32.mrf.mxu0
    %v988 = vadd.f32 %v732, %v987
    %v989 = vpop.f32.mrf.mxu0
    %990 = vmatprep.mubr.f32.mxu0 0.0
    %991 = vmatmul.mubr.f32.gmra.mxu0 %v793
    %v992 = vpop.f32.mrf.mxu0
    %v993 = vadd.f32 %v732, %v992
    %v994 = vpop.f32.mrf.mxu0
    %995 = vmatprep.mubr.f32.mxu0 0.0
    %996 = vmatmul.mubr.f32.gmra.mxu0 %v796
    %v997 = vpop.f32.mrf.mxu0
    %v998 = vadd.f32 %v732, %v997
    %v999 = vpop.f32.mrf.mxu0
    %1000 = vmatprep.mubr.f32.mxu0 0.0
    %1001 = vmatmul.mubr.f32.gmra.mxu0 %v799
    %v1002 = vpop.f32.mrf.mxu0
    %v1003 = vadd.f32 %v732, %v1002
    %v1004 = vpop.f32.mrf.mxu0
    %1005 = vmatprep.mubr.f32.mxu0 0.0
    %1006 = vmatmul.mubr.f32.gmra.mxu0 %v802
    %v1007 = vpop.f32.mrf.mxu0
    %v1008 = vadd.f32 %v732, %v1007
    %v1009 = vpop.f32.mrf.mxu0
    %1010 = vmatprep.mubr.f32.mxu0 0.0
    %1011 = vmatmul.mubr.f32.gmra.mxu0 %v805
    %v1012 = vpop.f32.mrf.mxu0
    %v1013 = vadd.f32 %v732, %v1012
    %v1014 = vpop.f32.mrf.mxu0
    %1015 = vmatprep.mubr.f32.mxu0 0.0
    %1016 = vmatmul.mubr.f32.gmra.mxu0 %v808
    %v1017 = vpop.f32.mrf.mxu0
    %v1018 = vadd.f32 %v732, %v1017
    %v1019 = vpop.f32.mrf.mxu0
    %1020 = vmatprep.mubr.f32.mxu0 0.0
    %1021 = vmatmul.mubr.f32.gmra.mxu0 %v811
    %v1022 = vpop.f32.mrf.mxu0
    %v1023 = vadd.f32 %v732, %v1022
    %v1024 = vpop.f32.mrf.mxu0
    %1025 = vmatprep.mubr.f32.mxu0 0.0
    %1026 = vmatmul.mubr.f32.gmra.mxu0 %v814
    %v1027 = vpop.f32.mrf.mxu0
    %v1028 = vadd.f32 %v732, %v1027
    %v1029 = vpop.f32.mrf.mxu0
    %1030 = vmatprep.mubr.f32.mxu0 0.0
    %1031 = vmatmul.mubr.f32.gmra.mxu0 %v817
    %v1032 = vpop.f32.mrf.mxu0
    %v1033 = vadd.f32 %v732, %v1032
    %v1034 = vpop.f32.mrf.mxu0
    %1035 = vmatprep.mubr.f32.mxu0 0.0
    %1036 = vmatmul.mubr.f32.gmra.mxu0 %v820
    %v1037 = vpop.f32.mrf.mxu0
    %v1038 = vadd.f32 %v732, %v1037
    %v1039 = vpop.f32.mrf.mxu0
    %1040 = vmatprep.mubr.f32.mxu0 0.0
    %1041 = vmatmul.mubr.f32.gmra.mxu0 %v823
    %v1042 = vpop.f32.mrf.mxu0
    %v1043 = vadd.f32 %v732, %v1042
    %v1044 = vpop.f32.mrf.mxu0
    %1045 = vmatprep.mubr.f32.mxu0 0.0
    %1046 = vmatmul.mubr.f32.gmra.mxu0 %v826
    %v1047 = vpop.f32.mrf.mxu0
    %v1048 = vadd.f32 %v732, %v1047
    %v1049 = vpop.f32.mrf.mxu0
    %1050 = vmatprep.mubr.f32.mxu0 0.0
    %1051 = vmatmul.mubr.f32.gmra.mxu0 %v829
    %v1052 = vpop.f32.mrf.mxu0
    %v1053 = vadd.f32 %v732, %v1052
    %v1054 = vpop.f32.mrf.mxu0
    %1055 = vdwg.mxu0
    %vm1056 = vcmask 261120
    %1057 = vst.msk [vmem:[%s6] sm:$0xff] %vm1056, %v898
    %1058 = vst.msk [vmem:[%s6 + $0x8] sm:$0xff] %vm1056, %v903
    %1059 = vst.msk [vmem:[%s6 + $0x10] sm:$0xff] %vm1056, %v908
    %1060 = vst.msk [vmem:[%s6 + $0x18] sm:$0xff] %vm1056, %v913
    %1061 = vst.msk [vmem:[%s6 + $0x20] sm:$0xff] %vm1056, %v918
    %1062 = vst.msk [vmem:[%s6 + $0x28] sm:$0xff] %vm1056, %v923
    %1063 = vst.msk [vmem:[%s6 + $0x30] sm:$0xff] %vm1056, %v928
    %1064 = vst.msk [vmem:[%s6 + $0x38] sm:$0xff] %vm1056, %v933
    %1065 = vst.msk [vmem:[%s6 + $0x40] sm:$0xff] %vm1056, %v938
    %1066 = vst.msk [vmem:[%s6 + $0x48] sm:$0xff] %vm1056, %v943
    %1067 = vst.msk [vmem:[%s6 + $0x50] sm:$0xff] %vm1056, %v948
    %1068 = vst.msk [vmem:[%s6 + $0x58] sm:$0xff] %vm1056, %v953
    %1069 = vst.msk [vmem:[%s6 + $0x60] sm:$0xff] %vm1056, %v958
    %1070 = vst.msk [vmem:[%s6 + $0x68] sm:$0xff] %vm1056, %v963
    %1071 = vst.msk [vmem:[%s6 + $0x70] sm:$0xff] %vm1056, %v968
    %1072 = vst.msk [vmem:[%s6 + $0x78] sm:$0xff] %vm1056, %v973
    %1073 = vst.msk [vmem:[%s6 + $0x80] sm:$0xff] %vm1056, %v978
    %1074 = vst.msk [vmem:[%s6 + $0x88] sm:$0xff] %vm1056, %v983
    %1075 = vst.msk [vmem:[%s6 + $0x90] sm:$0xff] %vm1056, %v988
    %1076 = vst.msk [vmem:[%s6 + $0x98] sm:$0xff] %vm1056, %v993
    %1077 = vst.msk [vmem:[%s6 + $0xa0] sm:$0xff] %vm1056, %v998
    %1078 = vst.msk [vmem:[%s6 + $0xa8] sm:$0xff] %vm1056, %v1003
    %1079 = vst.msk [vmem:[%s6 + $0xb0] sm:$0xff] %vm1056, %v1008
    %1080 = vst.msk [vmem:[%s6 + $0xb8] sm:$0xff] %vm1056, %v1013
    %1081 = vst.msk [vmem:[%s6 + $0xc0] sm:$0xff] %vm1056, %v1018
    %1082 = vst.msk [vmem:[%s6 + $0xc8] sm:$0xff] %vm1056, %v1023
    %1083 = vst.msk [vmem:[%s6 + $0xd0] sm:$0xff] %vm1056, %v1028
    %1084 = vst.msk [vmem:[%s6 + $0xd8] sm:$0xff] %vm1056, %v1033
    %1085 = vst.msk [vmem:[%s6 + $0xe0] sm:$0xff] %vm1056, %v1038
    %1086 = vst.msk [vmem:[%s6 + $0xe8] sm:$0xff] %vm1056, %v1043
    %1087 = vst.msk [vmem:[%s6 + $0xf0] sm:$0xff] %vm1056, %v1048
    %1088 = vst.msk [vmem:[%s6 + $0xf8] sm:$0xff] %vm1056, %v1053
    %s1089 = sld [smem:[#allocation2]]
    %v1090 = vstv %s1089
    %v1091 = vrcp.pop %v1090
    %s1092 = vtos %v1091
    %v1093 = vmax.f32 %v898, 1e-06
    %v1094 = vmax.f32 %v903, 1e-06
    %v1095 = vmax.f32 %v908, 1e-06
    %v1096 = vmax.f32 %v913, 1e-06
    %v1097 = vmax.f32 %v918, 1e-06
    %v1098 = vmax.f32 %v923, 1e-06
    %v1099 = vmax.f32 %v928, 1e-06
    %v1100 = vmax.f32 %v933, 1e-06
    %v1101 = vmax.f32 %v938, 1e-06
    %v1102 = vmax.f32 %v943, 1e-06
    %v1103 = vmax.f32 %v948, 1e-06
    %v1104 = vmax.f32 %v953, 1e-06
    %v1105 = vmax.f32 %v958, 1e-06
    %v1106 = vmax.f32 %v963, 1e-06
    %v1107 = vmax.f32 %v968, 1e-06
    %v1108 = vmax.f32 %v973, 1e-06
    %v1109 = vmax.f32 %v978, 1e-06
    %v1110 = vmax.f32 %v983, 1e-06
    %v1111 = vmax.f32 %v988, 1e-06
    %v1112 = vmax.f32 %v993, 1e-06
    %v1113 = vmax.f32 %v998, 1e-06
    %v1114 = vmax.f32 %v1003, 1e-06
    %v1115 = vmax.f32 %v1008, 1e-06
    %v1116 = vmax.f32 %v1013, 1e-06
    %v1117 = vmax.f32 %v1018, 1e-06
    %v1118 = vmax.f32 %v1023, 1e-06
    %v1119 = vmax.f32 %v1028, 1e-06
    %v1120 = vmax.f32 %v1033, 1e-06
    %v1121 = vmax.f32 %v1038, 1e-06
    %v1122 = vmax.f32 %v1043, 1e-06
    %v1123 = vmax.f32 %v1048, 1e-06
    %v1124 = vmax.f32 %v1053, 1e-06
    %v1125 = vlog2.pop %v1093
    %v1126 = vmul.f32 %v1125, 0.6931472
    %v1127 = vlog2.pop %v1094
    %v1128 = vmul.f32 %v1127, 0.6931472
    %v1129 = vlog2.pop %v1095
    %v1130 = vmul.f32 %v1129, 0.6931472
    %v1131 = vlog2.pop %v1096
    %v1132 = vmul.f32 %v1131, 0.6931472
    %v1133 = vlog2.pop %v1097
    %v1134 = vmul.f32 %v1133, 0.6931472
    %v1135 = vlog2.pop %v1098
    %v1136 = vmul.f32 %v1135, 0.6931472
    %v1137 = vlog2.pop %v1099
    %v1138 = vmul.f32 %v1137, 0.6931472
    %v1139 = vlog2.pop %v1100
    %v1140 = vmul.f32 %v1139, 0.6931472
    %v1141 = vlog2.pop %v1101
    %v1142 = vmul.f32 %v1141, 0.6931472
    %v1143 = vlog2.pop %v1102
    %v1144 = vmul.f32 %v1143, 0.6931472
    %v1145 = vlog2.pop %v1103
    %v1146 = vmul.f32 %v1145, 0.6931472
    %v1147 = vlog2.pop %v1104
    %v1148 = vmul.f32 %v1147, 0.6931472
    %v1149 = vlog2.pop %v1105
    %v1150 = vmul.f32 %v1149, 0.6931472
    %v1151 = vlog2.pop %v1106
    %v1152 = vmul.f32 %v1151, 0.6931472
    %v1153 = vlog2.pop %v1107
    %v1154 = vmul.f32 %v1153, 0.6931472
    %v1155 = vlog2.pop %v1108
    %v1156 = vmul.f32 %v1155, 0.6931472
    %v1157 = vlog2.pop %v1109
    %v1158 = vmul.f32 %v1157, 0.6931472
    %v1159 = vlog2.pop %v1110
    %v1160 = vmul.f32 %v1159, 0.6931472
    %v1161 = vlog2.pop %v1111
    %v1162 = vmul.f32 %v1161, 0.6931472
    %v1163 = vlog2.pop %v1112
    %v1164 = vmul.f32 %v1163, 0.6931472
    %v1165 = vlog2.pop %v1113
    %v1166 = vmul.f32 %v1165, 0.6931472
    %v1167 = vlog2.pop %v1114
    %v1168 = vmul.f32 %v1167, 0.6931472
    %v1169 = vlog2.pop %v1115
    %v1170 = vmul.f32 %v1169, 0.6931472
    %v1171 = vlog2.pop %v1116
    %v1172 = vmul.f32 %v1171, 0.6931472
    %v1173 = vlog2.pop %v1117
    %v1174 = vmul.f32 %v1173, 0.6931472
    %v1175 = vlog2.pop %v1118
    %v1176 = vmul.f32 %v1175, 0.6931472
    %v1177 = vlog2.pop %v1119
    %v1178 = vmul.f32 %v1177, 0.6931472
    %v1179 = vlog2.pop %v1120
    %v1180 = vmul.f32 %v1179, 0.6931472
    %v1181 = vlog2.pop %v1121
    %v1182 = vmul.f32 %v1181, 0.6931472
    %v1183 = vlog2.pop %v1122
    %v1184 = vmul.f32 %v1183, 0.6931472
    %v1185 = vlog2.pop %v1123
    %v1186 = vmul.f32 %v1185, 0.6931472
    %v1187 = vlog2.pop %v1124
    %v1188 = vmul.f32 %v1187, 0.6931472
    %v1189 = vstv %s1089
    %v1190 = vmul.f32 %v1189, %v1126
    %v1191 = vmul.f32 %v1189, %v1128
    %v1192 = vmul.f32 %v1189, %v1130
    %v1193 = vmul.f32 %v1189, %v1132
    %v1194 = vmul.f32 %v1189, %v1134
    %v1195 = vmul.f32 %v1189, %v1136
    %v1196 = vmul.f32 %v1189, %v1138
    %v1197 = vmul.f32 %v1189, %v1140
    %v1198 = vmul.f32 %v1189, %v1142
    %v1199 = vmul.f32 %v1189, %v1144
    %v1200 = vmul.f32 %v1189, %v1146
    %v1201 = vmul.f32 %v1189, %v1148
    %v1202 = vmul.f32 %v1189, %v1150
    %v1203 = vmul.f32 %v1189, %v1152
    %v1204 = vmul.f32 %v1189, %v1154
    %v1205 = vmul.f32 %v1189, %v1156
    %v1206 = vmul.f32 %v1189, %v1158
    %v1207 = vmul.f32 %v1189, %v1160
    %v1208 = vmul.f32 %v1189, %v1162
    %v1209 = vmul.f32 %v1189, %v1164
    %v1210 = vmul.f32 %v1189, %v1166
    %v1211 = vmul.f32 %v1189, %v1168
    %v1212 = vmul.f32 %v1189, %v1170
    %v1213 = vmul.f32 %v1189, %v1172
    %v1214 = vmul.f32 %v1189, %v1174
    %v1215 = vmul.f32 %v1189, %v1176
    %v1216 = vmul.f32 %v1189, %v1178
    %v1217 = vmul.f32 %v1189, %v1180
    %v1218 = vmul.f32 %v1189, %v1182
    %v1219 = vmul.f32 %v1189, %v1184
    %v1220 = vmul.f32 %v1189, %v1186
    %v1221 = vmul.f32 %v1189, %v1188
    %v1222 = vmul.f32 %v1190, 1.442695
    %v1223 = vpow.pop %v1222
    %v1224 = vmul.f32 %v1191, 1.442695
    %v1225 = vpow.pop %v1224
    %v1226 = vmul.f32 %v1192, 1.442695
    %v1227 = vpow.pop %v1226
    %v1228 = vmul.f32 %v1193, 1.442695
    %v1229 = vpow.pop %v1228
    %v1230 = vmul.f32 %v1194, 1.442695
    %v1231 = vpow.pop %v1230
    %v1232 = vmul.f32 %v1195, 1.442695
    %v1233 = vpow.pop %v1232
    %v1234 = vmul.f32 %v1196, 1.442695
    %v1235 = vpow.pop %v1234
    %v1236 = vmul.f32 %v1197, 1.442695
    %v1237 = vpow.pop %v1236
    %v1238 = vmul.f32 %v1198, 1.442695
    %v1239 = vpow.pop %v1238
    %v1240 = vmul.f32 %v1199, 1.442695
    %v1241 = vpow.pop %v1240
    %v1242 = vmul.f32 %v1200, 1.442695
    %v1243 = vpow.pop %v1242
    %v1244 = vmul.f32 %v1201, 1.442695
    %v1245 = vpow.pop %v1244
    %v1246 = vmul.f32 %v1202, 1.442695
    %v1247 = vpow.pop %v1246
    %v1248 = vmul.f32 %v1203, 1.442695
    %v1249 = vpow.pop %v1248
    %v1250 = vmul.f32 %v1204, 1.442695
    %v1251 = vpow.pop %v1250
    %v1252 = vmul.f32 %v1205, 1.442695
    %v1253 = vpow.pop %v1252
    %v1254 = vmul.f32 %v1206, 1.442695
    %v1255 = vpow.pop %v1254
    %v1256 = vmul.f32 %v1207, 1.442695
    %v1257 = vpow.pop %v1256
    %v1258 = vmul.f32 %v1208, 1.442695
    %v1259 = vpow.pop %v1258
    %v1260 = vmul.f32 %v1209, 1.442695
    %v1261 = vpow.pop %v1260
    %v1262 = vmul.f32 %v1210, 1.442695
    %v1263 = vpow.pop %v1262
    %v1264 = vmul.f32 %v1211, 1.442695
    %v1265 = vpow.pop %v1264
    %v1266 = vmul.f32 %v1212, 1.442695
    %v1267 = vpow.pop %v1266
    %v1268 = vmul.f32 %v1213, 1.442695
    %v1269 = vpow.pop %v1268
    %v1270 = vmul.f32 %v1214, 1.442695
    %v1271 = vpow.pop %v1270
    %v1272 = vmul.f32 %v1215, 1.442695
    %v1273 = vpow.pop %v1272
    %v1274 = vmul.f32 %v1216, 1.442695
    %v1275 = vpow.pop %v1274
    %v1276 = vmul.f32 %v1217, 1.442695
    %v1277 = vpow.pop %v1276
    %v1278 = vmul.f32 %v1218, 1.442695
    %v1279 = vpow.pop %v1278
    %v1280 = vmul.f32 %v1219, 1.442695
    %v1281 = vpow.pop %v1280
    %v1282 = vmul.f32 %v1220, 1.442695
    %v1283 = vpow.pop %v1282
    %v1284 = vmul.f32 %v1221, 1.442695
    %v1285 = vpow.pop %v1284
    %v1286 = vsel %vm1056, %v1223, 0.0
    %v1287 = vsel %vm1056, %v1225, 0.0
    %v1288 = vadd.f32 %v1286, %v1287
    %v1289 = vsel %vm1056, %v1227, 0.0
    %v1290 = vadd.f32 %v1288, %v1289
    %v1291 = vsel %vm1056, %v1229, 0.0
    %v1292 = vadd.f32 %v1290, %v1291
    %v1293 = vsel %vm1056, %v1231, 0.0
    %v1294 = vadd.f32 %v1292, %v1293
    %v1295 = vsel %vm1056, %v1233, 0.0
    %v1296 = vadd.f32 %v1294, %v1295
    %v1297 = vsel %vm1056, %v1235, 0.0
    %v1298 = vadd.f32 %v1296, %v1297
    %v1299 = vsel %vm1056, %v1237, 0.0
    %v1300 = vadd.f32 %v1298, %v1299
    %v1301 = vsel %vm1056, %v1239, 0.0
    %v1302 = vadd.f32 %v1300, %v1301
    %v1303 = vsel %vm1056, %v1241, 0.0
    %v1304 = vadd.f32 %v1302, %v1303
    %v1305 = vsel %vm1056, %v1243, 0.0
    %v1306 = vadd.f32 %v1304, %v1305
    %v1307 = vsel %vm1056, %v1245, 0.0
    %v1308 = vadd.f32 %v1306, %v1307
    %v1309 = vsel %vm1056, %v1247, 0.0
    %v1310 = vadd.f32 %v1308, %v1309
    %v1311 = vsel %vm1056, %v1249, 0.0
    %v1312 = vadd.f32 %v1310, %v1311
    %v1313 = vsel %vm1056, %v1251, 0.0
    %v1314 = vadd.f32 %v1312, %v1313
    %v1315 = vsel %vm1056, %v1253, 0.0
    %v1316 = vadd.f32 %v1314, %v1315
    %v1317 = vrot.slane %v1316, 4
    %v1318 = vadd.f32 %v1316, %v1317
    %v1319 = vrot.slane %v1318, 2
    %v1320 = vadd.f32 %v1318, %v1319
    %v1321 = vrot.slane %v1320, 1
    %v1322 = vadd.f32 %v1320, %v1321
    %v1323 = vrcp.pop 128.0
    %v1324 = vmul.f32 %v1322, %v1323
    %v1325 = vsel %vm1056, %v1255, 0.0
    %v1326 = vsel %vm1056, %v1257, 0.0
    %v1327 = vadd.f32 %v1325, %v1326
    %v1328 = vsel %vm1056, %v1259, 0.0
    %v1329 = vadd.f32 %v1327, %v1328
    %v1330 = vsel %vm1056, %v1261, 0.0
    %v1331 = vadd.f32 %v1329, %v1330
    %v1332 = vsel %vm1056, %v1263, 0.0
    %v1333 = vadd.f32 %v1331, %v1332
    %v1334 = vsel %vm1056, %v1265, 0.0
    %v1335 = vadd.f32 %v1333, %v1334
    %v1336 = vsel %vm1056, %v1267, 0.0
    %v1337 = vadd.f32 %v1335, %v1336
    %v1338 = vsel %vm1056, %v1269, 0.0
    %v1339 = vadd.f32 %v1337, %v1338
    %v1340 = vsel %vm1056, %v1271, 0.0
    %v1341 = vadd.f32 %v1339, %v1340
    %v1342 = vsel %vm1056, %v1273, 0.0
    %v1343 = vadd.f32 %v1341, %v1342
    %v1344 = vsel %vm1056, %v1275, 0.0
    %v1345 = vadd.f32 %v1343, %v1344
    %v1346 = vsel %vm1056, %v1277, 0.0
    %v1347 = vadd.f32 %v1345, %v1346
    %v1348 = vsel %vm1056, %v1279, 0.0
    %v1349 = vadd.f32 %v1347, %v1348
    %v1350 = vsel %vm1056, %v1281, 0.0
    %v1351 = vadd.f32 %v1349, %v1350
    %v1352 = vsel %vm1056, %v1283, 0.0
    %v1353 = vadd.f32 %v1351, %v1352
    %v1354 = vsel %vm1056, %v1285, 0.0
    %v1355 = vadd.f32 %v1353, %v1354
    %v1356 = vrot.slane %v1355, 4
    %v1357 = vadd.f32 %v1355, %v1356
    %v1358 = vrot.slane %v1357, 2
    %v1359 = vadd.f32 %v1357, %v1358
    %v1360 = vrot.slane %v1359, 1
    %v1361 = vadd.f32 %v1359, %v1360
    %v1362 = vmul.f32 %v1361, %v1323
    %vm1363 = vcmask 1040384
    %v1364 = vsel %vm1363, %v1324, %v1362
    %v1365 = vlog2.pop %v1364
    %v1366 = vmul.f32 %v1365, 0.6931472
    %v1367 = vstv %s1092
    %v1368 = vmul.f32 %v1366, %v1367
    %v1369 = vmul.f32 %v1368, 1.442695
    %v1370 = vpow.pop %v1369
    %vm1371 = vcmask 254976
    %1372 = vst.msk [vmem:[#allocation3] sm:$0x3] %vm1371, %v1370
    // Predicated region
    $region26: #{epn_gem_forward.1} parent=1 // pred_check
      _
    $region27: #{epn_gem_forward.1} parent=1 // pred_check_branch
      %1374 = sbr.rel (0) target = $region29
    $region28: #{epn_gem_forward.1} parent=1 // pred_region
      _
    $region29: #{epn_gem_forward.1} parent=1 // pred_fallthru
      _
    // Predicated region
    $region30: #{epn_gem_forward.1} parent=1 // pred_check
      _
    $region31: #{epn_gem_forward.1} parent=1 // pred_check_branch
      %1376 = sbr.rel (0) target = $region33
    $region32: #{epn_gem_forward.1} parent=1 // pred_region
      %s1378 = ssub.s32 32, 32
      %1379 = vsyncadd [#allocation4], %s1378
      %s1381 = sshll.u32 [#allocation3], 4
      %s1382 = int_to_ptr.vmem [resolvable:$true] %s1381
      %1384 = dma.vmem_to_hbm [thread:$0]  %s1382, 32, %s7, [#allocation4]
    $region33: #{epn_gem_forward.1} parent=1 // pred_fallthru
      _
    // Predicated region
    $region34: #{epn_gem_forward.1} parent=1 // pred_check
      _
    $region35: #{epn_gem_forward.1} parent=1 // pred_check_branch
      %1386 = sbr.rel (0) target = $region37
    $region36: #{epn_gem_forward.1} parent=1 // pred_region
      _
    $region37: #{epn_gem_forward.1} parent=1 // pred_fallthru
      _
    // Predicated region
    $region38: #{epn_gem_forward.1} parent=1 // pred_check
      _
    $region39: #{epn_gem_forward.1} parent=1 // pred_check_branch
      %1388 = sbr.rel (0) target = $region41
    $region40: #{epn_gem_forward.1} parent=1 // pred_region
      %1389 = dma.done [#allocation4], 32
    $region41: #{epn_gem_forward.1} parent=1 // pred_fallthru
      _
    %1390 = vsyncpa [#allocation4], 1

</llo_original>
